<compile_context>
chip_gen: v6e
topology: v6e:2x2x1
jax: 0.10.0
libtpu: 0.0.40
codegen_flags: <defaults>
</compile_context>

<pallas_src>
import jax
import jax.numpy as jnp
from jax.experimental import pallas as pl
from jax.experimental.pallas import tpu as pltpu


def _resgcn_kernel(x_ref, t_ref, w_ref, lnp_ref, o_ref):
    # x_ref / o_ref : (M, L) f32, M = batch_block * C (batch stacked on the M/sublane axis)
    # t_ref         : (L, L)  bf16 temporal mixing matrix
    # w_ref         : (2M, M) bf16; rows [0:M)  = block-diag (I - 11^T/C) @ kron(F, S).T
    #                               rows [M:2M) = block-diag 11^T/C (per-batch group average)
    # lnp_ref       : (M, 2)  f32; col 0 = LN weight, col 1 = LN bias (tiled per batch)
    M = x_ref.shape[0]
    x = x_ref[...]                                                    # (M, L) f32
    w = w_ref[...]                                                    # (2M, M) bf16
    cmix = w[:M]                                                      # (M, M)
    avg = w[M:]                                                       # (M, M)

    # Temporal mixing: einsum('bfsl,lm->bfsm') == x @ temporalMat, batch stacked in M.
    y = jnp.dot(x.astype(jnp.bfloat16), t_ref[...],
                preferred_element_type=jnp.float32)                   # (M, L) f32

    # Feature + spatial channel mixing, fused with the LayerNorm mean removal.
    yc = jnp.dot(cmix, y.astype(jnp.bfloat16),
                 preferred_element_type=jnp.float32)                  # (M, L), zero-mean per (b, l)

    # LayerNorm variance per (batch, time step), broadcast to every channel row
    # via the block-diagonal group-average matmul (MXU does the reduction, not XLU).
    var = jnp.dot(avg, (yc * yc).astype(jnp.bfloat16),
                  preferred_element_type=jnp.float32)                 # (M, L)

    lnp = lnp_ref[...]
    yn = yc * jax.lax.rsqrt(var + 1e-5) * lnp[:, 0:1] + lnp[:, 1:2]

    # tanh, dropout (eval-mode identity), residual add.
    # TODO(synk): training-mode dropout (pltpu.prng_seed / prng_random_bits) not implemented.
    o_ref[...] = jnp.tanh(yn) + x


def precompute_resgcn_params(temporal_mat, feature_mat, spatial_mat, ln_w, ln_b,
                             *, batch_block):
    """One-time parameter setup (plain-JAX glue, hoisted out of the forward path)."""
    Fdim, Hdim = feature_mat.shape
    S = spatial_mat.shape[0]
    Cin, Cout = Fdim * S, Hdim * S
    assert Cin == Cout, "resGCN residual add requires in_feature == hidden_dim"
    C = Cout
    # Channel layout of x.view(-1, in_feature, 3, L) is feature-major / spatial-minor,
    # so the fused feature+spatial channel-mixing matrix is kron(F, S).T.
    mkt = jnp.kron(feature_mat, spatial_mat).T.astype(jnp.float32)    # (C, C)
    # Fold the LayerNorm mean subtraction (a linear map over channels) into the mix.
    center = jnp.eye(C, dtype=jnp.float32) - jnp.full((C, C), 1.0 / C, jnp.float32)
    cmix = center @ mkt                                               # (C, C)
    eye_b = jnp.eye(batch_block, dtype=jnp.float32)
    cmix_blk = jnp.kron(eye_b, cmix)                                  # (M, M)
    avg_blk = jnp.kron(eye_b, jnp.full((C, C), 1.0 / C, jnp.float32))  # (M, M)
    # Single merged bf16 weight slab: [centered mix ; group average] -> one input DMA.
    w_blk = jnp.concatenate([cmix_blk, avg_blk], axis=0).astype(jnp.bfloat16)  # (2M, M)
    ln_blk = jnp.tile(jnp.stack([ln_w, ln_b], axis=-1).astype(jnp.float32),
                      (batch_block, 1))                               # (M, 2)
    return {
        "t": temporal_mat.astype(jnp.bfloat16),                       # (L, L)
        "w": w_blk,                                                   # (2M, M)
        "ln": ln_blk,                                                 # (M, 2)
    }


def resgcn_forward(x, kparams, *, batch_block):
    """Pallas forward for resGCN (inference mode).

    `kparams` must come from precompute_resgcn_params(..., batch_block=batch_block).
    """
    B, C, L = x.shape
    assert B % batch_block == 0, (B, batch_block)
    M = batch_block * C
    assert kparams["w"].shape == (2 * M, M), (kparams["w"].shape, M)
    nblk = B // batch_block

    x2 = x.reshape(B * C, L)            # free reshape: batch folded into the M/sublane axis
    out2 = pl.pallas_call(
        _resgcn_kernel,
        out_shape=jax.ShapeDtypeStruct((B * C, L), x.dtype),
        grid=(nblk,),
        in_specs=[
            pl.BlockSpec((M, L), lambda i: (i, 0)),        # x (batch_block batch elems)
            pl.BlockSpec((L, L), lambda i: (0, 0)),        # temporalMat (bf16)
            pl.BlockSpec((2 * M, M), lambda i: (0, 0)),    # merged [centered mix ; avg] (bf16)
            pl.BlockSpec((M, 2), lambda i: (0, 0)),        # LN weight|bias (merged, f32)
        ],
        out_specs=pl.BlockSpec((M, L), lambda i: (i, 0)),
        compiler_params=pltpu.CompilerParams(
            dimension_semantics=("parallel",)),
    )(x2, kparams["t"], kparams["w"], kparams["ln"])
    return out2.reshape(B, C, L)


def resgcn_reference(x, temporal_mat, feature_mat, spatial_mat, ln_w, ln_b):
    """Pure-JAX reference mirroring the PyTorch forward (eval mode), f32 ground truth."""
    B, C, L = x.shape
    Fdim = feature_mat.shape[0]
    hp = jax.lax.Precision.HIGHEST
    xr = x.reshape(B, Fdim, 3, L)
    y = jnp.einsum('bfsl,lm->bfsm', xr, temporal_mat, precision=hp)
    y = jnp.einsum('bfsl,fm->bmsl', y, feature_mat, precision=hp)
    y = jnp.einsum('bfsl,sm->bfml', y, spatial_mat, precision=hp)
    y = y.reshape(B, C, L)
    yt = jnp.transpose(y, (0, 2, 1))                     # (B, L, C)
    mean = jnp.mean(yt, axis=-1, keepdims=True)
    var = jnp.mean(jnp.square(yt - mean), axis=-1, keepdims=True)
    yt = (yt - mean) / jnp.sqrt(var + 1e-5) * ln_w + ln_b
    y = jnp.transpose(yt, (0, 2, 1))
    return jnp.tanh(y) + x


if __name__ == "__main__":
    B = 2
    in_feature = 16          # resGCN default; hidden_dim == in_feature == 16
    seq_length = 40
    C = 3 * in_feature       # 48

    key = jax.random.PRNGKey(0)
    kx, kt, kf, ks = jax.random.split(key, 4)
    x = jax.random.normal(kx, (B, C, seq_length), jnp.float32)
    temporal_mat = jax.random.normal(kt, (seq_length, seq_length), jnp.float32)
    feature_mat = jax.random.normal(kf, (in_feature, in_feature), jnp.float32)
    spatial_mat = jax.random.normal(ks, (3, 3), jnp.float32)
    ln_w = jnp.ones((C,), jnp.float32)    # nn.LayerNorm default init
    ln_b = jnp.zeros((C,), jnp.float32)

    # B=2 is launch-bound -> one grid step covering all batches.
    # On v7x with larger B, use batch_block = B // 2 so both TensorCores get work.
    batch_block = B
    kparams = precompute_resgcn_params(temporal_mat, feature_mat, spatial_mat,
                                       ln_w, ln_b, batch_block=batch_block)

    fwd = jax.jit(resgcn_forward, static_argnames=("batch_block",))
    out = jax.block_until_ready(fwd(x, kparams, batch_block=batch_block))

    ref = resgcn_reference(x, temporal_mat, feature_mat, spatial_mat, ln_w, ln_b)
    assert out.shape == x.shape, (out.shape, x.shape)
    max_err = float(jnp.max(jnp.abs(out - ref)))
    # bf16 MXU inputs => tolerance at bf16 level, not f32 level.
    assert max_err < 5e-2, f"max_err={max_err}"

    print("KERNEL_OK")
</pallas_src>

<mosaic_0001>
module attributes {stable_mosaic.version = 11 : i64} {
  func.func @_resgcn_kernel(%arg0: i32, %arg1: memref<96x40xf32, #tpu.memory_space<vmem>>, %arg2: memref<40x40xbf16, #tpu.memory_space<vmem>>, %arg3: memref<192x96xbf16, #tpu.memory_space<vmem>>, %arg4: memref<96x2xf32, #tpu.memory_space<vmem>>, %arg5: memref<96x40xf32, #tpu.memory_space<vmem>>) attributes {dimension_semantics = [#tpu.dimension_semantics<parallel>], iteration_bounds = array<i64: 1>, scalar_prefetch = 0 : i64, scratch_operands = 0 : i64, tpu.core_type = #tpu.core_type<tc>, window_params = [{transform_indices = @transform_0, window_bounds = array<i64: 96, 40>}, {pipeline_mode = #tpu.pipeline_mode<synchronous>, transform_indices = @transform_1, window_bounds = array<i64: 40, 40>}, {pipeline_mode = #tpu.pipeline_mode<synchronous>, transform_indices = @transform_2, window_bounds = array<i64: 192, 96>}, {pipeline_mode = #tpu.pipeline_mode<synchronous>, transform_indices = @transform_3, window_bounds = array<i64: 96, 2>}, {transform_indices = @transform_4, window_bounds = array<i64: 96, 40>}]} {
    %c0 = arith.constant 0 : index
    %c0_0 = arith.constant 0 : index
    %0 = vector.load %arg1[%c0, %c0_0] : memref<96x40xf32, #tpu.memory_space<vmem>>, vector<96x40xf32>
    %c0_1 = arith.constant 0 : index
    %c0_2 = arith.constant 0 : index
    %1 = vector.load %arg3[%c0_1, %c0_2] : memref<192x96xbf16, #tpu.memory_space<vmem>>, vector<192x96xbf16>
    %2 = vector.extract_strided_slice %1 {offsets = [0, 0], sizes = [96, 96], strides = [1, 1]} : vector<192x96xbf16> to vector<96x96xbf16>
    %3 = vector.extract_strided_slice %1 {offsets = [96, 0], sizes = [96, 96], strides = [1, 1]} : vector<192x96xbf16> to vector<96x96xbf16>
    %4 = arith.truncf %0 : vector<96x40xf32> to vector<96x40xbf16>
    %c0_3 = arith.constant 0 : index
    %c0_4 = arith.constant 0 : index
    %5 = vector.load %arg2[%c0_3, %c0_4] : memref<40x40xbf16, #tpu.memory_space<vmem>>, vector<40x40xbf16>
    %cst = arith.constant dense<0.000000e+00> : vector<96x40xf32>
    %6 = tpu.matmul %4, %5, %cst {dimension_numbers = #tpu.dot_dimension_numbers<[1], [0], [0], [1], [0, 0, 1, 1], [], []>} : vector<96x40xbf16>, vector<40x40xbf16>, vector<96x40xf32> -> vector<96x40xf32>
    %7 = arith.truncf %6 : vector<96x40xf32> to vector<96x40xbf16>
    %cst_5 = arith.constant dense<0.000000e+00> : vector<96x40xf32>
    %8 = tpu.matmul %2, %7, %cst_5 {dimension_numbers = #tpu.dot_dimension_numbers<[1], [0], [0], [1], [0, 0, 1, 1], [], []>} : vector<96x96xbf16>, vector<96x40xbf16>, vector<96x40xf32> -> vector<96x40xf32>
    %9 = arith.mulf %8, %8 : vector<96x40xf32>
    %10 = arith.truncf %9 : vector<96x40xf32> to vector<96x40xbf16>
    %cst_6 = arith.constant dense<0.000000e+00> : vector<96x40xf32>
    %11 = tpu.matmul %3, %10, %cst_6 {dimension_numbers = #tpu.dot_dimension_numbers<[1], [0], [0], [1], [0, 0, 1, 1], [], []>} : vector<96x96xbf16>, vector<96x40xbf16>, vector<96x40xf32> -> vector<96x40xf32>
    %c0_7 = arith.constant 0 : index
    %c0_8 = arith.constant 0 : index
    %12 = vector.load %arg4[%c0_7, %c0_8] : memref<96x2xf32, #tpu.memory_space<vmem>>, vector<96x2xf32>
    %cst_9 = arith.constant 9.99999974E-6 : f32
    %13 = vector.broadcast %cst_9 : f32 to vector<96x40xf32>
    %14 = arith.addf %11, %13 : vector<96x40xf32>
    %15 = math.rsqrt %14 : vector<96x40xf32>
    %16 = arith.mulf %8, %15 : vector<96x40xf32>
    %17 = vector.extract_strided_slice %12 {offsets = [0, 0], sizes = [96, 1], strides = [1, 1]} : vector<96x2xf32> to vector<96x1xf32>
    %18 = vector.broadcast %17 : vector<96x1xf32> to vector<96x40xf32>
    %19 = arith.mulf %16, %18 : vector<96x40xf32>
    %20 = vector.extract_strided_slice %12 {offsets = [0, 1], sizes = [96, 1], strides = [1, 1]} : vector<96x2xf32> to vector<96x1xf32>
    %21 = vector.broadcast %20 : vector<96x1xf32> to vector<96x40xf32>
    %22 = arith.addf %19, %21 : vector<96x40xf32>
    %23 = math.tanh %22 : vector<96x40xf32>
    %24 = arith.addf %23, %0 : vector<96x40xf32>
    %c0_10 = arith.constant 0 : index
    %c0_11 = arith.constant 0 : index
    %25 = vector.load %arg5[%c0_10, %c0_11] : memref<96x40xf32, #tpu.memory_space<vmem>>, vector<96x40xf32>
    tpu.vector_store %arg5[%c0_10, %c0_11], %24 {strides = array<i32>} : memref<96x40xf32, #tpu.memory_space<vmem>>, vector<96x40xf32>,
    return
  }
  func.func @transform_0(%arg0: i32) -> (i32, i32) {
    %c0_i32 = arith.constant 0 : i32
    %c0_i32_0 = arith.constant 0 : i32
    return %arg0, %c0_i32 : i32, i32
  }
  func.func @transform_1(%arg0: i32) -> (i32, i32) {
    %c0_i32 = arith.constant 0 : i32
    %c0_i32_0 = arith.constant 0 : i32
    %c0_i32_1 = arith.constant 0 : i32
    return %c0_i32, %c0_i32_0 : i32, i32
  }
  func.func @transform_2(%arg0: i32) -> (i32, i32) {
    %c0_i32 = arith.constant 0 : i32
    %c0_i32_0 = arith.constant 0 : i32
    %c0_i32_1 = arith.constant 0 : i32
    return %c0_i32, %c0_i32_0 : i32, i32
  }
  func.func @transform_3(%arg0: i32) -> (i32, i32) {
    %c0_i32 = arith.constant 0 : i32
    %c0_i32_0 = arith.constant 0 : i32
    %c0_i32_1 = arith.constant 0 : i32
    return %c0_i32, %c0_i32_0 : i32, i32
  }
  func.func @transform_4(%arg0: i32) -> (i32, i32) {
    %c0_i32 = arith.constant 0 : i32
    %c0_i32_0 = arith.constant 0 : i32
    return %arg0, %c0_i32 : i32, i32
  }
}

</mosaic_0001>

<llo_original>
// kernel: resgcn_forward.1
$region0: #{resgcn_forward.1}
  #allocation0 [shape = 'u32[]', space=smem, size = 0x4, offset = 0x4, fixed_abs, tag = 'smem constant byte address 0x4 - core index']
  #allocation1 [shape = 'u32[144,128]{1,0:T(1,128)}', space=vmem, size = 0x12000, scoped, tag = 'internal scratch']
  %s0 = inlined_call_operand.vmem [shape: f32[96,40], index: 0, kind: input, shape index: {}]
  %s1 = inlined_call_operand.vmem [shape: bf16[40,40], index: 1, kind: input, shape index: {}]
  %s2 = inlined_call_operand.vmem [shape: bf16[192,96], index: 2, kind: input, shape index: {}]
  %s3 = inlined_call_operand.vmem [shape: f32[96,2], index: 3, kind: input, shape index: {}]
  %s4 = inlined_call_operand.vmem [shape: f32[96,40], index: 4, kind: output, shape index: {}]
  %s5 = sld [smem:[#allocation0]]
  $region26: #{resgcn_forward.1} parent=0
    _
  %s7 = ssub.s32 1, %s5
  %s8 = scalar_select 0, %s7, %s5
  // Predicated region
  $region2: #{resgcn_forward.1} parent=0 // pred_check
    _
  $region3: #{resgcn_forward.1} parent=0 // pred_check_branch
    %10 = sbr.rel (0) target = $region5
  $region4: #{resgcn_forward.1} parent=0 // pred_region
    _
  $region5: #{resgcn_forward.1} parent=0 // pred_fallthru
    _
  // Predicated region
  $region6: #{resgcn_forward.1} parent=0 // pred_check
    _
  $region7: #{resgcn_forward.1} parent=0 // pred_check_branch
    %12 = sbr.rel (0) target = $region9
  $region8: #{resgcn_forward.1} parent=0 // pred_region
    _
  $region9: #{resgcn_forward.1} parent=0 // pred_fallthru
    _
  // Predicated region
  $region10: #{resgcn_forward.1} parent=0 // pred_check
    _
  $region11: #{resgcn_forward.1} parent=0 // pred_check_branch
    %14 = sbr.rel (0) target = $region13
  $region12: #{resgcn_forward.1} parent=0 // pred_region
    _
  $region13: #{resgcn_forward.1} parent=0 // pred_fallthru
    _
  // Predicated region
  $region14: #{resgcn_forward.1} parent=0 // pred_check
    _
  $region15: #{resgcn_forward.1} parent=0 // pred_check_branch
    %16 = sbr.rel (0) target = $region17
  $region16: #{resgcn_forward.1} parent=0 // pred_region
    _
  $region17: #{resgcn_forward.1} parent=0 // pred_fallthru
    _
  %v18 = vld [vmem:[%s0] sm:$0xff]
  %v19 = vld [vmem:[%s0 + $0x8] sm:$0xff]
  %v20 = vld [vmem:[%s0 + $0x10] sm:$0xff]
  %v21 = vld [vmem:[%s0 + $0x18] sm:$0xff]
  %v22 = vld [vmem:[%s0 + $0x20] sm:$0xff]
  %v23 = vld [vmem:[%s0 + $0x28] sm:$0xff]
  %v24 = vld [vmem:[%s0 + $0x30] sm:$0xff]
  %v25 = vld [vmem:[%s0 + $0x38] sm:$0xff]
  %v26 = vld [vmem:[%s0 + $0x40] sm:$0xff]
  %v27 = vld [vmem:[%s0 + $0x48] sm:$0xff]
  %v28 = vld [vmem:[%s0 + $0x50] sm:$0xff]
  %v29 = vld [vmem:[%s0 + $0x58] sm:$0xff]
  %v30 = vld [vmem:[%s2] sm:$0xf]
  %v31 = vld [vmem:[%s2 + $0x4] sm:$0xf]
  %v32 = vld [vmem:[%s2 + $0x8] sm:$0xf]
  %v33 = vld [vmem:[%s2 + $0xc] sm:$0xf]
  %v34 = vld [vmem:[%s2 + $0x10] sm:$0xf]
  %v35 = vld [vmem:[%s2 + $0x14] sm:$0xf]
  %v36 = vld [vmem:[%s2 + $0x18] sm:$0xf]
  %v37 = vld [vmem:[%s2 + $0x1c] sm:$0xf]
  %v38 = vld [vmem:[%s2 + $0x20] sm:$0xf]
  %v39 = vld [vmem:[%s2 + $0x24] sm:$0xf]
  %v40 = vld [vmem:[%s2 + $0x28] sm:$0xf]
  %v41 = vld [vmem:[%s2 + $0x2c] sm:$0xf]
  %v42 = vld [vmem:[%s2 + $0x30] sm:$0xf]
  %v43 = vld [vmem:[%s2 + $0x34] sm:$0xf]
  %v44 = vld [vmem:[%s2 + $0x38] sm:$0xf]
  %v45 = vld [vmem:[%s2 + $0x3c] sm:$0xf]
  %v46 = vld [vmem:[%s2 + $0x40] sm:$0xf]
  %v47 = vld [vmem:[%s2 + $0x44] sm:$0xf]
  %v48 = vld [vmem:[%s2 + $0x48] sm:$0xf]
  %v49 = vld [vmem:[%s2 + $0x4c] sm:$0xf]
  %v50 = vld [vmem:[%s2 + $0x50] sm:$0xf]
  %v51 = vld [vmem:[%s2 + $0x54] sm:$0xf]
  %v52 = vld [vmem:[%s2 + $0x58] sm:$0xf]
  %v53 = vld [vmem:[%s2 + $0x5c] sm:$0xf]
  %v54 = vpack.c.bf16 %v19, %v18
  %v55 = vpack.c.bf16 %v21, %v20
  %v56 = vpack.c.bf16 %v23, %v22
  %v57 = vpack.c.bf16 %v25, %v24
  %v58 = vpack.c.bf16 %v27, %v26
  %v59 = vpack.c.bf16 %v29, %v28
  %v60 = vld [vmem:[%s1] sm:$0xf]
  %v61 = vld [vmem:[%s1 + $0x4] sm:$0xf]
  %v62 = vld [vmem:[%s1 + $0x8] sm:$0xf]
  %v63 = vld [vmem:[%s1 + $0xc] sm:$0xf]
  %v64 = vld [vmem:[%s1 + $0x10] sm:$0xf]
  %v70 = vunpack.c.l.b16 %v60
  %v71 = vunpack.c.l.b16 %v61
  %v72 = vunpack.c.l.b16 %v62
  %v73 = vunpack.c.l.b16 %v63
  %v74 = vunpack.c.l.b16 %v64
  %v75 = vpack.c.b16 %v71, %v70
  %v76 = vpack.c.b16 %v73, %v72
  %v77 = vpack.c.b16 %v74, %v74
  %vm80 = vcmask 326656
  %v82 = vsel %vm80, %v54, 0
  %v85 = vsel %vm80, %v55, 0
  %v88 = vsel %vm80, %v56, 0
  %v91 = vsel %vm80, %v57, 0
  %v94 = vsel %vm80, %v58, 0
  %v97 = vsel %vm80, %v59, 0
  %vm99 = vcmask 1043456
  %v101 = vsel %vm99, %v77, 0
  %103 = vmatprep.subr.bf16.mxu0 0
  %104 = vmatpush1.bf16.msra.mxu0 0
  %105 = vmatprep.subr.bf16.mxu0 0
  %106 = vmatpush1.bf16.msra.mxu0 0
  %107 = vmatprep.subr.bf16.mxu0 0
  %108 = vmatpush1.bf16.msra.mxu0 0
  %109 = vmatprep.subr.bf16.mxu0 0
  %110 = vmatpush1.bf16.msra.mxu0 0
  %111 = vmatprep.subr.bf16.mxu0 0
  %112 = vmatpush1.bf16.msra.mxu0 0
  %113 = vmatprep.subr.bf16.mxu0 0
  %114 = vmatpush1.bf16.msra.mxu0 %v101
  %115 = vmatprep.subr.bf16.mxu0 0
  %116 = vmatpush1.bf16.msra.mxu0 %v76
  %117 = vmatprep.subr.bf16.mxu0 0
  %118 = vmatpush1.bf16.msra.mxu0 %v75
  %119 = vmatprep.subr.bf16.mxu0 0
  %120 = vmatpush2.bf16.msra.mxu0 0
  %121 = vmatprep.subr.bf16.mxu0 0
  %122 = vmatpush2.bf16.msra.mxu0 0
  %123 = vmatprep.subr.bf16.mxu0 0
  %124 = vmatpush2.bf16.msra.mxu0 0
  %125 = vmatprep.subr.bf16.mxu0 0
  %126 = vmatpush2.bf16.msra.mxu0 0
  %127 = vmatprep.subr.bf16.mxu0 0
  %128 = vmatpush2.bf16.msra.mxu0 0
  %129 = vmatprep.subr.bf16.mxu0 0
  %130 = vmatpush2.bf16.msra.mxu0 0
  %131 = vmatprep.subr.bf16.mxu0 0
  %132 = vmatpush2.bf16.msra.mxu0 0
  %133 = vmatprep.subr.bf16.mxu0 0
  %134 = vmatpush2.bf16.msra.mxu0 0
  %135 = vmatprep.mubr.bf16.mxu0 0
  %136 = vmatmul.mubr.bf16.gmra.mxu0 %v82
  %v137 = vpop.f32.mrf.mxu0
  %v138 = vadd.f32 0.0, %v137
  %v139 = vpop.f32.mrf.mxu0
  %v140 = vpop.f32.mrf.mxu0
  %v141 = vadd.f32 0.0, %v140
  %v142 = vpop.f32.mrf.mxu0
  %143 = vmatprep.mubr.bf16.mxu0 0
  %144 = vmatmul.mubr.bf16.gmra.mxu0 %v85
  %v145 = vpop.f32.mrf.mxu0
  %v146 = vadd.f32 0.0, %v145
  %v147 = vpop.f32.mrf.mxu0
  %v148 = vpop.f32.mrf.mxu0
  %v149 = vadd.f32 0.0, %v148
  %v150 = vpop.f32.mrf.mxu0
  %151 = vmatprep.mubr.bf16.mxu0 0
  %152 = vmatmul.mubr.bf16.gmra.mxu0 %v88
  %v153 = vpop.f32.mrf.mxu0
  %v154 = vadd.f32 0.0, %v153
  %v155 = vpop.f32.mrf.mxu0
  %v156 = vpop.f32.mrf.mxu0
  %v157 = vadd.f32 0.0, %v156
  %v158 = vpop.f32.mrf.mxu0
  %159 = vmatprep.mubr.bf16.mxu0 0
  %160 = vmatmul.mubr.bf16.gmra.mxu0 %v91
  %v161 = vpop.f32.mrf.mxu0
  %v162 = vadd.f32 0.0, %v161
  %v163 = vpop.f32.mrf.mxu0
  %v164 = vpop.f32.mrf.mxu0
  %v165 = vadd.f32 0.0, %v164
  %v166 = vpop.f32.mrf.mxu0
  %167 = vmatprep.mubr.bf16.mxu0 0
  %168 = vmatmul.mubr.bf16.gmra.mxu0 %v94
  %v169 = vpop.f32.mrf.mxu0
  %v170 = vadd.f32 0.0, %v169
  %v171 = vpop.f32.mrf.mxu0
  %v172 = vpop.f32.mrf.mxu0
  %v173 = vadd.f32 0.0, %v172
  %v174 = vpop.f32.mrf.mxu0
  %175 = vmatprep.mubr.bf16.mxu0 0
  %176 = vmatmul.mubr.bf16.gmra.mxu0 %v97
  %v177 = vpop.f32.mrf.mxu0
  %v178 = vadd.f32 0.0, %v177
  %v179 = vpop.f32.mrf.mxu0
  %v180 = vpop.f32.mrf.mxu0
  %v181 = vadd.f32 0.0, %v180
  %v182 = vpop.f32.mrf.mxu0
  %183 = vdwg.mxu0
  %v184 = vpack.c.bf16 %v141, %v138
  %v185 = vpack.c.bf16 %v149, %v146
  %v186 = vpack.c.bf16 %v157, %v154
  %v187 = vpack.c.bf16 %v165, %v162
  %v188 = vpack.c.bf16 %v173, %v170
  %v189 = vpack.c.bf16 %v181, %v178
  %v202 = vunpack.c.l.b16 %v30
  %v203 = vunpack.c.l.b16 %v31
  %v204 = vunpack.c.l.b16 %v32
  %v205 = vunpack.c.l.b16 %v33
  %v206 = vunpack.c.l.b16 %v34
  %v207 = vunpack.c.l.b16 %v35
  %v208 = vunpack.c.l.b16 %v36
  %v209 = vunpack.c.l.b16 %v37
  %v210 = vunpack.c.l.b16 %v38
  %v211 = vunpack.c.l.b16 %v39
  %v212 = vunpack.c.l.b16 %v40
  %v213 = vunpack.c.l.b16 %v41
  %v214 = vpack.c.b16 %v203, %v202
  %v215 = vpack.c.b16 %v205, %v204
  %v216 = vpack.c.b16 %v207, %v206
  %v217 = vpack.c.b16 %v209, %v208
  %v218 = vpack.c.b16 %v211, %v210
  %v219 = vpack.c.b16 %v213, %v212
  %vm220 = vcmask 785408
  %v222 = vsel %vm220, %v214, 0
  %v225 = vsel %vm220, %v215, 0
  %v228 = vsel %vm220, %v216, 0
  %v231 = vsel %vm220, %v217, 0
  %v234 = vsel %vm220, %v218, 0
  %v237 = vsel %vm220, %v219, 0
  %239 = vmatprep.subr.bf16.mxu0 0
  %240 = vmatpush1.bf16.msra.mxu0 0
  %241 = vmatprep.subr.bf16.mxu0 0
  %242 = vmatpush1.bf16.msra.mxu0 0
  %243 = vmatprep.subr.bf16.mxu0 0
  %244 = vmatpush1.bf16.msra.mxu0 %v189
  %245 = vmatprep.subr.bf16.mxu0 0
  %246 = vmatpush1.bf16.msra.mxu0 %v188
  %247 = vmatprep.subr.bf16.mxu0 0
  %248 = vmatpush1.bf16.msra.mxu0 %v187
  %249 = vmatprep.subr.bf16.mxu0 0
  %250 = vmatpush1.bf16.msra.mxu0 %v186
  %251 = vmatprep.subr.bf16.mxu0 0
  %252 = vmatpush1.bf16.msra.mxu0 %v185
  %253 = vmatprep.subr.bf16.mxu0 0
  %254 = vmatpush1.bf16.msra.mxu0 %v184
  %255 = vmatprep.subr.bf16.mxu0 0
  %256 = vmatpush2.bf16.msra.mxu0 0
  %257 = vmatprep.subr.bf16.mxu0 0
  %258 = vmatpush2.bf16.msra.mxu0 0
  %259 = vmatprep.subr.bf16.mxu0 0
  %260 = vmatpush2.bf16.msra.mxu0 0
  %261 = vmatprep.subr.bf16.mxu0 0
  %262 = vmatpush2.bf16.msra.mxu0 0
  %263 = vmatprep.subr.bf16.mxu0 0
  %264 = vmatpush2.bf16.msra.mxu0 0
  %265 = vmatprep.subr.bf16.mxu0 0
  %266 = vmatpush2.bf16.msra.mxu0 0
  %267 = vmatprep.subr.bf16.mxu0 0
  %268 = vmatpush2.bf16.msra.mxu0 0
  %269 = vmatprep.subr.bf16.mxu0 0
  %270 = vmatpush2.bf16.msra.mxu0 0
  %271 = vmatprep.mubr.bf16.mxu0 0
  %272 = vmatmul.mubr.bf16.gmra.mxu0 %v222
  %v273 = vpop.f32.mrf.mxu0
  %v274 = vadd.f32 0.0, %v273
  %v275 = vpop.f32.mrf.mxu0
  %v276 = vpop.f32.mrf.mxu0
  %v277 = vadd.f32 0.0, %v276
  %v278 = vpop.f32.mrf.mxu0
  %279 = vmatprep.mubr.bf16.mxu0 0
  %280 = vmatmul.mubr.bf16.gmra.mxu0 %v225
  %v281 = vpop.f32.mrf.mxu0
  %v282 = vadd.f32 0.0, %v281
  %v283 = vpop.f32.mrf.mxu0
  %v284 = vpop.f32.mrf.mxu0
  %v285 = vadd.f32 0.0, %v284
  %v286 = vpop.f32.mrf.mxu0
  %287 = vmatprep.mubr.bf16.mxu0 0
  %288 = vmatmul.mubr.bf16.gmra.mxu0 %v228
  %v289 = vpop.f32.mrf.mxu0
  %v290 = vadd.f32 0.0, %v289
  %v291 = vpop.f32.mrf.mxu0
  %v292 = vpop.f32.mrf.mxu0
  %v293 = vadd.f32 0.0, %v292
  %v294 = vpop.f32.mrf.mxu0
  %295 = vmatprep.mubr.bf16.mxu0 0
  %296 = vmatmul.mubr.bf16.gmra.mxu0 %v231
  %v297 = vpop.f32.mrf.mxu0
  %v298 = vadd.f32 0.0, %v297
  %v299 = vpop.f32.mrf.mxu0
  %v300 = vpop.f32.mrf.mxu0
  %v301 = vadd.f32 0.0, %v300
  %v302 = vpop.f32.mrf.mxu0
  %303 = vmatprep.mubr.bf16.mxu0 0
  %304 = vmatmul.mubr.bf16.gmra.mxu0 %v234
  %v305 = vpop.f32.mrf.mxu0
  %v306 = vadd.f32 0.0, %v305
  %v307 = vpop.f32.mrf.mxu0
  %v308 = vpop.f32.mrf.mxu0
  %v309 = vadd.f32 0.0, %v308
  %v310 = vpop.f32.mrf.mxu0
  %311 = vmatprep.mubr.bf16.mxu0 0
  %312 = vmatmul.mubr.bf16.gmra.mxu0 %v237
  %v313 = vpop.f32.mrf.mxu0
  %v314 = vadd.f32 0.0, %v313
  %v315 = vpop.f32.mrf.mxu0
  %v316 = vpop.f32.mrf.mxu0
  %v317 = vadd.f32 0.0, %v316
  %v318 = vpop.f32.mrf.mxu0
  %319 = vdwg.mxu0
  %v320 = vmul.f32 %v274, %v274
  %v321 = vmul.f32 %v277, %v277
  %v322 = vmul.f32 %v282, %v282
  %v323 = vmul.f32 %v285, %v285
  %v324 = vmul.f32 %v290, %v290
  %v325 = vmul.f32 %v293, %v293
  %v326 = vmul.f32 %v298, %v298
  %v327 = vmul.f32 %v301, %v301
  %v328 = vmul.f32 %v306, %v306
  %v329 = vmul.f32 %v309, %v309
  %v330 = vmul.f32 %v314, %v314
  %v331 = vmul.f32 %v317, %v317
  %v332 = vpack.c.bf16 %v321, %v320
  %v333 = vpack.c.bf16 %v323, %v322
  %v334 = vpack.c.bf16 %v325, %v324
  %v335 = vpack.c.bf16 %v327, %v326
  %v336 = vpack.c.bf16 %v329, %v328
  %v337 = vpack.c.bf16 %v331, %v330
  %v338 = vld [vmem:[%s3] sm:$0xff]
  %v339 = vld [vmem:[%s3 + $0x8] sm:$0xff]
  %v340 = vld [vmem:[%s3 + $0x10] sm:$0xff]
  %v341 = vld [vmem:[%s3 + $0x18] sm:$0xff]
  %v342 = vld [vmem:[%s3 + $0x20] sm:$0xff]
  %v343 = vld [vmem:[%s3 + $0x28] sm:$0xff]
  %v344 = vld [vmem:[%s3 + $0x30] sm:$0xff]
  %v345 = vld [vmem:[%s3 + $0x38] sm:$0xff]
  %v346 = vld [vmem:[%s3 + $0x40] sm:$0xff]
  %v347 = vld [vmem:[%s3 + $0x48] sm:$0xff]
  %v348 = vld [vmem:[%s3 + $0x50] sm:$0xff]
  %v349 = vld [vmem:[%s3 + $0x58] sm:$0xff]
  %v362 = vunpack.c.l.b16 %v42
  %v363 = vunpack.c.l.b16 %v43
  %v364 = vunpack.c.l.b16 %v44
  %v365 = vunpack.c.l.b16 %v45
  %v366 = vunpack.c.l.b16 %v46
  %v367 = vunpack.c.l.b16 %v47
  %v368 = vunpack.c.l.b16 %v48
  %v369 = vunpack.c.l.b16 %v49
  %v370 = vunpack.c.l.b16 %v50
  %v371 = vunpack.c.l.b16 %v51
  %v372 = vunpack.c.l.b16 %v52
  %v373 = vunpack.c.l.b16 %v53
  %v374 = vpack.c.b16 %v363, %v362
  %v375 = vpack.c.b16 %v365, %v364
  %v376 = vpack.c.b16 %v367, %v366
  %v377 = vpack.c.b16 %v369, %v368
  %v378 = vpack.c.b16 %v371, %v370
  %v379 = vpack.c.b16 %v373, %v372
  %v381 = vsel %vm220, %v374, 0
  %v384 = vsel %vm220, %v375, 0
  %v387 = vsel %vm220, %v376, 0
  %v390 = vsel %vm220, %v377, 0
  %v393 = vsel %vm220, %v378, 0
  %v396 = vsel %vm220, %v379, 0
  %398 = vmatprep.subr.bf16.mxu0 0
  %399 = vmatpush1.bf16.msra.mxu0 0
  %400 = vmatprep.subr.bf16.mxu0 0
  %401 = vmatpush1.bf16.msra.mxu0 0
  %402 = vmatprep.subr.bf16.mxu0 0
  %403 = vmatpush1.bf16.msra.mxu0 %v337
  %404 = vmatprep.subr.bf16.mxu0 0
  %405 = vmatpush1.bf16.msra.mxu0 %v336
  %406 = vmatprep.subr.bf16.mxu0 0
  %407 = vmatpush1.bf16.msra.mxu0 %v335
  %408 = vmatprep.subr.bf16.mxu0 0
  %409 = vmatpush1.bf16.msra.mxu0 %v334
  %410 = vmatprep.subr.bf16.mxu0 0
  %411 = vmatpush1.bf16.msra.mxu0 %v333
  %412 = vmatprep.subr.bf16.mxu0 0
  %413 = vmatpush1.bf16.msra.mxu0 %v332
  %414 = vmatprep.subr.bf16.mxu0 0
  %415 = vmatpush2.bf16.msra.mxu0 0
  %416 = vmatprep.subr.bf16.mxu0 0
  %417 = vmatpush2.bf16.msra.mxu0 0
  %418 = vmatprep.subr.bf16.mxu0 0
  %419 = vmatpush2.bf16.msra.mxu0 0
  %420 = vmatprep.subr.bf16.mxu0 0
  %421 = vmatpush2.bf16.msra.mxu0 0
  %422 = vmatprep.subr.bf16.mxu0 0
  %423 = vmatpush2.bf16.msra.mxu0 0
  %424 = vmatprep.subr.bf16.mxu0 0
  %425 = vmatpush2.bf16.msra.mxu0 0
  %426 = vmatprep.subr.bf16.mxu0 0
  %427 = vmatpush2.bf16.msra.mxu0 0
  %428 = vmatprep.subr.bf16.mxu0 0
  %429 = vmatpush2.bf16.msra.mxu0 0
  %430 = vmatprep.mubr.bf16.mxu0 0
  %431 = vmatmul.mubr.bf16.gmra.mxu0 %v381
  %v432 = vpop.f32.mrf.mxu0
  %v433 = vadd.f32 1e-05, %v432
  %v434 = vpop.f32.mrf.mxu0
  %v435 = vpop.f32.mrf.mxu0
  %v436 = vadd.f32 1e-05, %v435
  %v437 = vpop.f32.mrf.mxu0
  %438 = vmatprep.mubr.bf16.mxu0 0
  %439 = vmatmul.mubr.bf16.gmra.mxu0 %v384
  %v440 = vpop.f32.mrf.mxu0
  %v441 = vadd.f32 1e-05, %v440
  %v442 = vpop.f32.mrf.mxu0
  %v443 = vpop.f32.mrf.mxu0
  %v444 = vadd.f32 1e-05, %v443
  %v445 = vpop.f32.mrf.mxu0
  %446 = vmatprep.mubr.bf16.mxu0 0
  %447 = vmatmul.mubr.bf16.gmra.mxu0 %v387
  %v448 = vpop.f32.mrf.mxu0
  %v449 = vadd.f32 1e-05, %v448
  %v450 = vpop.f32.mrf.mxu0
  %v451 = vpop.f32.mrf.mxu0
  %v452 = vadd.f32 1e-05, %v451
  %v453 = vpop.f32.mrf.mxu0
  %454 = vmatprep.mubr.bf16.mxu0 0
  %455 = vmatmul.mubr.bf16.gmra.mxu0 %v390
  %v456 = vpop.f32.mrf.mxu0
  %v457 = vadd.f32 1e-05, %v456
  %v458 = vpop.f32.mrf.mxu0
  %v459 = vpop.f32.mrf.mxu0
  %v460 = vadd.f32 1e-05, %v459
  %v461 = vpop.f32.mrf.mxu0
  %462 = vmatprep.mubr.bf16.mxu0 0
  %463 = vmatmul.mubr.bf16.gmra.mxu0 %v393
  %v464 = vpop.f32.mrf.mxu0
  %v465 = vadd.f32 1e-05, %v464
  %v466 = vpop.f32.mrf.mxu0
  %v467 = vpop.f32.mrf.mxu0
  %v468 = vadd.f32 1e-05, %v467
  %v469 = vpop.f32.mrf.mxu0
  %470 = vmatprep.mubr.bf16.mxu0 0
  %471 = vmatmul.mubr.bf16.gmra.mxu0 %v396
  %v472 = vpop.f32.mrf.mxu0
  %v473 = vadd.f32 1e-05, %v472
  %v474 = vpop.f32.mrf.mxu0
  %v475 = vpop.f32.mrf.mxu0
  %v476 = vadd.f32 1e-05, %v475
  %v477 = vpop.f32.mrf.mxu0
  %478 = vdwg.mxu0
  %v479 = vrsqrt.pop %v433
  %v480 = vrsqrt.pop %v436
  %v481 = vrsqrt.pop %v441
  %v482 = vrsqrt.pop %v444
  %v483 = vrsqrt.pop %v449
  %v484 = vrsqrt.pop %v452
  %v485 = vrsqrt.pop %v457
  %v486 = vrsqrt.pop %v460
  %v487 = vrsqrt.pop %v465
  %v488 = vrsqrt.pop %v468
  %v489 = vrsqrt.pop %v473
  %v490 = vrsqrt.pop %v476
  %v491 = vmul.f32 %v274, %v479
  %v492 = vmul.f32 %v277, %v480
  %v493 = vmul.f32 %v282, %v481
  %v494 = vmul.f32 %v285, %v482
  %v495 = vmul.f32 %v290, %v483
  %v496 = vmul.f32 %v293, %v484
  %v497 = vmul.f32 %v298, %v485
  %v498 = vmul.f32 %v301, %v486
  %v499 = vmul.f32 %v306, %v487
  %v500 = vmul.f32 %v309, %v488
  %v501 = vmul.f32 %v314, %v489
  %v502 = vmul.f32 %v317, %v490
  %504 = vset.pattern.permute.xlu0 0
  %505 = vperm.xlu0 %504, %v338
  %v506 = vpop.permute.xlu0 %505
  %509 = vset.pattern.permute.xlu0 0
  %510 = vperm.xlu0 %509, %v339
  %v511 = vpop.permute.xlu0 %510
  %514 = vset.pattern.permute.xlu0 0
  %515 = vperm.xlu0 %514, %v340
  %v516 = vpop.permute.xlu0 %515
  %519 = vset.pattern.permute.xlu0 0
  %520 = vperm.xlu0 %519, %v341
  %v521 = vpop.permute.xlu0 %520
  %524 = vset.pattern.permute.xlu0 0
  %525 = vperm.xlu0 %524, %v342
  %v526 = vpop.permute.xlu0 %525
  %529 = vset.pattern.permute.xlu0 0
  %530 = vperm.xlu0 %529, %v343
  %v531 = vpop.permute.xlu0 %530
  %534 = vset.pattern.permute.xlu0 0
  %535 = vperm.xlu0 %534, %v344
  %v536 = vpop.permute.xlu0 %535
  %539 = vset.pattern.permute.xlu0 0
  %540 = vperm.xlu0 %539, %v345
  %v541 = vpop.permute.xlu0 %540
  %544 = vset.pattern.permute.xlu0 0
  %545 = vperm.xlu0 %544, %v346
  %v546 = vpop.permute.xlu0 %545
  %549 = vset.pattern.permute.xlu0 0
  %550 = vperm.xlu0 %549, %v347
  %v551 = vpop.permute.xlu0 %550
  %554 = vset.pattern.permute.xlu0 0
  %555 = vperm.xlu0 %554, %v348
  %v556 = vpop.permute.xlu0 %555
  %559 = vset.pattern.permute.xlu0 0
  %560 = vperm.xlu0 %559, %v349
  %v561 = vpop.permute.xlu0 %560
  %v563 = vmul.f32 %v491, %v506
  %v564 = vmul.f32 %v492, %v511
  %v565 = vmul.f32 %v493, %v516
  %v566 = vmul.f32 %v494, %v521
  %v567 = vmul.f32 %v495, %v526
  %v568 = vmul.f32 %v496, %v531
  %v569 = vmul.f32 %v497, %v536
  %v570 = vmul.f32 %v498, %v541
  %v571 = vmul.f32 %v499, %v546
  %v572 = vmul.f32 %v500, %v551
  %v573 = vmul.f32 %v501, %v556
  %v574 = vmul.f32 %v502, %v561
  %575 = vset.pattern.permute.xlu0 1
  %576 = vperm.xlu0 %575, %v338
  %v577 = vpop.permute.xlu0 %576
  %579 = vset.pattern.permute.xlu0 1
  %580 = vperm.xlu0 %579, %v339
  %v581 = vpop.permute.xlu0 %580
  %583 = vset.pattern.permute.xlu0 1
  %584 = vperm.xlu0 %583, %v340
  %v585 = vpop.permute.xlu0 %584
  %587 = vset.pattern.permute.xlu0 1
  %588 = vperm.xlu0 %587, %v341
  %v589 = vpop.permute.xlu0 %588
  %591 = vset.pattern.permute.xlu0 1
  %592 = vperm.xlu0 %591, %v342
  %v593 = vpop.permute.xlu0 %592
  %595 = vset.pattern.permute.xlu0 1
  %596 = vperm.xlu0 %595, %v343
  %v597 = vpop.permute.xlu0 %596
  %599 = vset.pattern.permute.xlu0 1
  %600 = vperm.xlu0 %599, %v344
  %v601 = vpop.permute.xlu0 %600
  %603 = vset.pattern.permute.xlu0 1
  %604 = vperm.xlu0 %603, %v345
  %v605 = vpop.permute.xlu0 %604
  %607 = vset.pattern.permute.xlu0 1
  %608 = vperm.xlu0 %607, %v346
  %v609 = vpop.permute.xlu0 %608
  %611 = vset.pattern.permute.xlu0 1
  %612 = vperm.xlu0 %611, %v347
  %v613 = vpop.permute.xlu0 %612
  %615 = vset.pattern.permute.xlu0 1
  %616 = vperm.xlu0 %615, %v348
  %v617 = vpop.permute.xlu0 %616
  %619 = vset.pattern.permute.xlu0 1
  %620 = vperm.xlu0 %619, %v349
  %v621 = vpop.permute.xlu0 %620
  %v623 = vadd.f32 %v563, %v577
  %v624 = vadd.f32 %v564, %v581
  %v625 = vadd.f32 %v565, %v585
  %v626 = vadd.f32 %v566, %v589
  %v627 = vadd.f32 %v567, %v593
  %v628 = vadd.f32 %v568, %v597
  %v629 = vadd.f32 %v569, %v601
  %v630 = vadd.f32 %v570, %v605
  %v631 = vadd.f32 %v571, %v609
  %v632 = vadd.f32 %v572, %v613
  %v633 = vadd.f32 %v573, %v617
  %v634 = vadd.f32 %v574, %v621
  %v635 = vtanh.pop %v623
  %v636 = vtanh.pop %v624
  %v637 = vtanh.pop %v625
  %v638 = vtanh.pop %v626
  %v639 = vtanh.pop %v627
  %v640 = vtanh.pop %v628
  %v641 = vtanh.pop %v629
  %v642 = vtanh.pop %v630
  %v643 = vtanh.pop %v631
  %v644 = vtanh.pop %v632
  %v645 = vtanh.pop %v633
  %v646 = vtanh.pop %v634
  %v647 = vadd.f32 %v635, %v18
  %v648 = vadd.f32 %v636, %v19
  %v649 = vadd.f32 %v637, %v20
  %v650 = vadd.f32 %v638, %v21
  %v651 = vadd.f32 %v639, %v22
  %v652 = vadd.f32 %v640, %v23
  %v653 = vadd.f32 %v641, %v24
  %v654 = vadd.f32 %v642, %v25
  %v655 = vadd.f32 %v643, %v26
  %v656 = vadd.f32 %v644, %v27
  %v657 = vadd.f32 %v645, %v28
  %v658 = vadd.f32 %v646, %v29
  %659 = vst.msk [vmem:[%s4] sm:$0xff] %vm80, %v647
  %660 = vst.msk [vmem:[%s4 + $0x8] sm:$0xff] %vm80, %v648
  %661 = vst.msk [vmem:[%s4 + $0x10] sm:$0xff] %vm80, %v649
  %662 = vst.msk [vmem:[%s4 + $0x18] sm:$0xff] %vm80, %v650
  %663 = vst.msk [vmem:[%s4 + $0x20] sm:$0xff] %vm80, %v651
  %664 = vst.msk [vmem:[%s4 + $0x28] sm:$0xff] %vm80, %v652
  %665 = vst.msk [vmem:[%s4 + $0x30] sm:$0xff] %vm80, %v653
  %666 = vst.msk [vmem:[%s4 + $0x38] sm:$0xff] %vm80, %v654
  %667 = vst.msk [vmem:[%s4 + $0x40] sm:$0xff] %vm80, %v655
  %668 = vst.msk [vmem:[%s4 + $0x48] sm:$0xff] %vm80, %v656
  %669 = vst.msk [vmem:[%s4 + $0x50] sm:$0xff] %vm80, %v657
  %670 = vst.msk [vmem:[%s4 + $0x58] sm:$0xff] %vm80, %v658
  // Predicated region
  $region18: #{resgcn_forward.1} parent=0 // pred_check
    _
  $region19: #{resgcn_forward.1} parent=0 // pred_check_branch
    %672 = sbr.rel (0) target = $region21
  $region20: #{resgcn_forward.1} parent=0 // pred_region
    _
  $region21: #{resgcn_forward.1} parent=0 // pred_fallthru
    _
  // Predicated region
  $region22: #{resgcn_forward.1} parent=0 // pred_check
    _
  $region23: #{resgcn_forward.1} parent=0 // pred_check_branch
    %674 = sbr.rel (0) target = $region25
  $region24: #{resgcn_forward.1} parent=0 // pred_region
    _
  $region25: #{resgcn_forward.1} parent=0 // pred_fallthru
    _

</llo_original>
